<compile_context>
chip_gen: v7x
topology: tpu7x:2x2x1
jax: 0.10.0
libtpu: 0.0.40
codegen_flags: <defaults>
</compile_context>

<pallas_src>
import jax
import jax.numpy as jnp
from jax import lax
from jax.experimental import pallas as pl
from jax.experimental.pallas import tpu as pltpu

# ---- module constants (from the PyTorch file); small-but-consistent test shapes ----
EMBED_DIM    = 516          # embedding_dim
CONTEXT_SIZE = 64           # context_size  (T == context_size, so the tril mask is exact)
HEAD_SIZE    = 64           # head_size argument passed to Head(...)
BATCH        = 4
NEG_INF      = -1e30        # finite stand-in for float('-inf'): identical softmax result
                            # (every row has >=1 unmasked entry) and NaN-safe if T-tiling
                            # is ever introduced.


def _head_kernel(x_ref, w_ref, b_ref, o_ref):
    """Fused Head.forward for one batch element.

    x_ref: (1, T, D)   w_ref: (D, 3H)   b_ref: (1, 3H)   o_ref: (1, T, H)
    """
    x = x_ref[0]                                                  # (T, D)

    # --- merged K/Q/V projection: one MXU matmul + VPU bias add ---
    kqv = jnp.dot(x, w_ref[...], preferred_element_type=jnp.float32) + b_ref[...]
    k = kqv[:, 0 * HEAD_SIZE:1 * HEAD_SIZE]                       # (T, H)
    q = kqv[:, 1 * HEAD_SIZE:2 * HEAD_SIZE]                       # (T, H)
    v = kqv[:, 2 * HEAD_SIZE:3 * HEAD_SIZE]                       # (T, H)

    # --- scores: K @ Q^T (module quirk: K on the left). Contract last dims of
    #     both operands so no explicit transpose is materialized. ---
    wei = lax.dot_general(k, q, (((1,), (1,)), ((), ())),
                          preferred_element_type=jnp.float32)     # (T, T)
    wei = wei * (float(HEAD_SIZE) ** -0.5)                        # key.shape[-1] ** -0.5

    # --- causal mask: masked_fill(tril == 0, -inf) ---
    T = wei.shape[0]
    row = lax.broadcasted_iota(jnp.int32, (T, T), 0)
    col = lax.broadcasted_iota(jnp.int32, (T, T), 1)
    wei = jnp.where(col <= row, wei, NEG_INF)

    # --- softmax over the last axis ---
    wei = wei - jnp.max(wei, axis=-1, keepdims=True)
    e = jnp.exp(wei)
    p = e / jnp.sum(e, axis=-1, keepdims=True)
    # TODO(synk): nn.Dropout(0.2) on the attention weights is the identity in eval
    # mode; training-mode stochastic dropout (pltpu.prng_*) is not implemented.

    # --- out = wei @ V ---
    o_ref[0] = jnp.dot(p, v, preferred_element_type=jnp.float32)


def head_forward(x, w_kqv, b_kqv):
    """x: (B, T, D) f32; w_kqv: (D, 3H) = [Wk | Wq | Wv]; b_kqv: (3H,). -> (B, T, H)."""
    B, T, D = x.shape
    H3 = w_kqv.shape[1]
    H = H3 // 3
    return pl.pallas_call(
        _head_kernel,
        out_shape=jax.ShapeDtypeStruct((B, T, H), jnp.float32),
        grid=(B,),
        in_specs=[
            pl.BlockSpec((1, T, D), lambda b: (b, 0, 0)),     # per-batch activations
            pl.BlockSpec((D, H3), lambda b: (0, 0)),          # weights: VMEM-resident
            pl.BlockSpec((1, H3), lambda b: (0, 0)),          # bias:    VMEM-resident
        ],
        out_specs=pl.BlockSpec((1, T, H), lambda b: (b, 0, 0)),
        compiler_params=pltpu.CompilerParams(
            dimension_semantics=("parallel",)),               # megacore-shardable batch
    )(x, w_kqv, b_kqv.reshape(1, H3))


# ----------------------- pure-JAX reference (correctness check) -----------------------

def head_reference(x, w_kqv, b_kqv):
    H = HEAD_SIZE
    kqv = x @ w_kqv + b_kqv
    k, q, v = kqv[..., :H], kqv[..., H:2 * H], kqv[..., 2 * H:]
    wei = jnp.einsum("bkh,bqh->bkq", k, q) * (float(H) ** -0.5)   # K @ Q^T
    T = x.shape[1]
    mask = jnp.tril(jnp.ones((T, T), dtype=bool))
    wei = jnp.where(mask, wei, NEG_INF)
    p = jax.nn.softmax(wei, axis=-1)
    return jnp.einsum("bkq,bqh->bkh", p, v)


# --------------------------------------- main -----------------------------------------

if __name__ == "__main__":
    key = jax.random.PRNGKey(0)
    kx, kk, kq, kv, kb = jax.random.split(key, 5)

    x = jax.random.normal(kx, (BATCH, CONTEXT_SIZE, EMBED_DIM), jnp.float32)

    # Per-projection weights stored (in_features, out_features) — the transpose of
    # nn.Linear's (out, in) layout, same math: y = x @ W + b. Merged [K | Q | V]
    # along the output axis so the kernel issues a single projection matmul.
    wk = jax.random.normal(kk, (EMBED_DIM, HEAD_SIZE), jnp.float32) * 0.02
    wq = jax.random.normal(kq, (EMBED_DIM, HEAD_SIZE), jnp.float32) * 0.02
    wv = jax.random.normal(kv, (EMBED_DIM, HEAD_SIZE), jnp.float32) * 0.02
    w_kqv = jnp.concatenate([wk, wq, wv], axis=1)                 # (D, 3H)
    b_kqv = jax.random.normal(kb, (3 * HEAD_SIZE,), jnp.float32) * 0.02

    out = jax.jit(head_forward)(x, w_kqv, b_kqv)
    jax.block_until_ready(out)

    assert out.shape == (BATCH, CONTEXT_SIZE, HEAD_SIZE)
    assert bool(jnp.all(jnp.isfinite(out)))

    ref = head_reference(x, w_kqv, b_kqv)
    max_err = float(jnp.max(jnp.abs(out - ref)))
    assert bool(jnp.allclose(out, ref, rtol=1e-3, atol=1e-3)), max_err

    print("KERNEL_OK")
</pallas_src>

<mosaic_0001>
module attributes {stable_mosaic.version = 11 : i64} {
  func.func @_head_kernel(%arg0: i32, %arg1: memref<1x64x516xf32, #tpu.memory_space<vmem>>, %arg2: memref<516x192xf32, #tpu.memory_space<vmem>>, %arg3: memref<1x192xf32, #tpu.memory_space<vmem>>, %arg4: memref<1x64x64xf32, #tpu.memory_space<vmem>>) attributes {dimension_semantics = [#tpu.dimension_semantics<parallel>], iteration_bounds = array<i64: 4>, scalar_prefetch = 0 : i64, scratch_operands = 0 : i64, tpu.core_type = #tpu.core_type<tc>, window_params = [{transform_indices = @transform_0, window_bounds = array<i64: 1, 64, 516>}, {pipeline_mode = #tpu.pipeline_mode<synchronous>, transform_indices = @transform_1, window_bounds = array<i64: 516, 192>}, {pipeline_mode = #tpu.pipeline_mode<synchronous>, transform_indices = @transform_2, window_bounds = array<i64: 1, 192>}, {transform_indices = @transform_3, window_bounds = array<i64: 1, 64, 64>}]} {
    %c0 = arith.constant 0 : index
    %c0_0 = arith.constant 0 : index
    %c0_1 = arith.constant 0 : index
    %0 = vector.load %arg1[%c0, %c0_0, %c0_1] : memref<1x64x516xf32, #tpu.memory_space<vmem>>, vector<1x64x516xf32>
    %1 = vector.shape_cast %0 : vector<1x64x516xf32> to vector<64x516xf32>
    %c0_2 = arith.constant 0 : index
    %c0_3 = arith.constant 0 : index
    %2 = vector.load %arg2[%c0_2, %c0_3] : memref<516x192xf32, #tpu.memory_space<vmem>>, vector<516x192xf32>
    %cst = arith.constant dense<0.000000e+00> : vector<64x192xf32>
    %3 = tpu.matmul %1, %2, %cst {dimension_numbers = #tpu.dot_dimension_numbers<[1], [0], [0], [1], [0, 0, 1, 1], [], []>} : vector<64x516xf32>, vector<516x192xf32>, vector<64x192xf32> -> vector<64x192xf32>
    %c0_4 = arith.constant 0 : index
    %c0_5 = arith.constant 0 : index
    %4 = vector.load %arg3[%c0_4, %c0_5] : memref<1x192xf32, #tpu.memory_space<vmem>>, vector<1x192xf32>
    %5 = vector.broadcast %4 : vector<1x192xf32> to vector<64x192xf32>
    %6 = arith.addf %3, %5 : vector<64x192xf32>
    %7 = vector.extract_strided_slice %6 {offsets = [0, 0], sizes = [64, 64], strides = [1, 1]} : vector<64x192xf32> to vector<64x64xf32>
    %8 = vector.extract_strided_slice %6 {offsets = [0, 64], sizes = [64, 64], strides = [1, 1]} : vector<64x192xf32> to vector<64x64xf32>
    %9 = vector.extract_strided_slice %6 {offsets = [0, 128], sizes = [64, 64], strides = [1, 1]} : vector<64x192xf32> to vector<64x64xf32>
    %cst_6 = arith.constant dense<0.000000e+00> : vector<64x64xf32>
    %10 = tpu.matmul %7, %8, %cst_6 {dimension_numbers = #tpu.dot_dimension_numbers<[1], [1], [0], [0], [0, 0, 1, 0], [], []>} : vector<64x64xf32>, vector<64x64xf32>, vector<64x64xf32> -> vector<64x64xf32>
    %cst_7 = arith.constant 1.250000e-01 : f32
    %11 = vector.broadcast %cst_7 : f32 to vector<64x64xf32>
    %12 = arith.mulf %10, %11 : vector<64x64xf32>
    %13 = tpu.iota {dimensions = array<i32: 0>} : vector<64x64xi32>
    %14 = tpu.iota {dimensions = array<i32: 1>} : vector<64x64xi32>
    %15 = arith.cmpi sle, %14, %13 : vector<64x64xi32>
    %cst_8 = arith.constant -1.000000e+30 : f32
    %16 = vector.broadcast %cst_8 : f32 to vector<64x64xf32>
    %17 = arith.select %15, %12, %16 : vector<64x64xi1>, vector<64x64xf32>
    %cst_9 = arith.constant dense<0xFF800000> : vector<64xf32>
    %18 = vector.multi_reduction <maximumf>, %17, %cst_9 [1] : vector<64x64xf32> to vector<64xf32>
    %19 = vector.shape_cast %18 : vector<64xf32> to vector<64x1xf32>
    %20 = vector.broadcast %19 : vector<64x1xf32> to vector<64x64xf32>
    %21 = arith.subf %17, %20 : vector<64x64xf32>
    %22 = math.exp %21 : vector<64x64xf32>
    %cst_10 = arith.constant dense<0.000000e+00> : vector<64xf32>
    %23 = vector.multi_reduction <add>, %22, %cst_10 [1] : vector<64x64xf32> to vector<64xf32>
    %24 = vector.shape_cast %23 : vector<64xf32> to vector<64x1xf32>
    %25 = vector.broadcast %24 : vector<64x1xf32> to vector<64x64xf32>
    %26 = arith.divf %22, %25 : vector<64x64xf32>
    %cst_11 = arith.constant dense<0.000000e+00> : vector<64x64xf32>
    %27 = tpu.matmul %26, %9, %cst_11 {dimension_numbers = #tpu.dot_dimension_numbers<[1], [0], [0], [1], [0, 0, 1, 1], [], []>} : vector<64x64xf32>, vector<64x64xf32>, vector<64x64xf32> -> vector<64x64xf32>
    %c0_12 = arith.constant 0 : index
    %c0_13 = arith.constant 0 : index
    %c0_14 = arith.constant 0 : index
    %28 = vector.load %arg4[%c0_12, %c0_13, %c0_14] : memref<1x64x64xf32, #tpu.memory_space<vmem>>, vector<1x64x64xf32>
    %29 = vector.shape_cast %28 : vector<1x64x64xf32> to vector<64x64xf32>
    %30 = vector.shape_cast %27 : vector<64x64xf32> to vector<1x64x64xf32>
    tpu.vector_store %arg4[%c0_12, %c0_13, %c0_14], %30 {strides = array<i32>} : memref<1x64x64xf32, #tpu.memory_space<vmem>>, vector<1x64x64xf32>,
    return
  }
  func.func @transform_0(%arg0: i32) -> (i32, i32, i32) {
    %c0_i32 = arith.constant 0 : i32
    %c0_i32_0 = arith.constant 0 : i32
    %c0_i32_1 = arith.constant 0 : i32
    return %arg0, %c0_i32, %c0_i32_0 : i32, i32, i32
  }
  func.func @transform_1(%arg0: i32) -> (i32, i32) {
    %c0_i32 = arith.constant 0 : i32
    %c0_i32_0 = arith.constant 0 : i32
    %c0_i32_1 = arith.constant 0 : i32
    return %c0_i32, %c0_i32_0 : i32, i32
  }
  func.func @transform_2(%arg0: i32) -> (i32, i32) {
    %c0_i32 = arith.constant 0 : i32
    %c0_i32_0 = arith.constant 0 : i32
    %c0_i32_1 = arith.constant 0 : i32
    return %c0_i32, %c0_i32_0 : i32, i32
  }
  func.func @transform_3(%arg0: i32) -> (i32, i32, i32) {
    %c0_i32 = arith.constant 0 : i32
    %c0_i32_0 = arith.constant 0 : i32
    %c0_i32_1 = arith.constant 0 : i32
    return %arg0, %c0_i32, %c0_i32_0 : i32, i32, i32
  }
}

</mosaic_0001>

<llo_original>
// kernel: head_forward.1
$region0: #{head_forward.1}
  #allocation0 [shape = 'u32[]', space=smem, size = 0x4, offset = 0x4, fixed_abs, tag = 'smem constant byte address 0x4 - core index']
  #allocation1 [shape = 'u32[144,128]{1,0:T(1,128)}', space=vmem, size = 0x12000, scoped, tag = 'internal scratch']
  %s0 = inlined_call_operand.vmem [shape: f32[4,64,516], index: 0, kind: input, shape index: {}]
  %s1 = inlined_call_operand.vmem [shape: f32[516,192], index: 1, kind: input, shape index: {}]
  %s2 = inlined_call_operand.vmem [shape: f32[1,192], index: 2, kind: input, shape index: {}]
  %s3 = inlined_call_operand.hbm [shape: f32[4,64,64], index: 3, kind: output, shape index: {}]
  %s4 = sld [smem:[#allocation0]]
  $region45: #{head_forward.1} parent=0
    _
  %s6 = ssub.s32 1, %s4
  %s7 = scalar_select 0, %s6, %s4
  $region1: #{head_forward.1} parent=0
    #allocation2 [shape = 'u8[65536]{0}', space=vmem, size = 0x10000, scoped, tag = 'output window, operand 0']
    #allocation3 [shape = 's32[2]{0}', space=sflag, size = 0x8, scoped, tag = 'scoped memory for head_forward.1']
    %8 = vsyncpa [#allocation3], 0
    %s9 = scalar_lea.sflag [#allocation3], 1
    %10 = vsyncpa %s9, 0
    loop: start=0, step=1, limit=6
    $region2: #{head_forward.1} parent=1 // loop_pre_header
      _
    $region3: #{head_forward.1} parent=1 // loop_header
      %s12 = sphi 0, %s16
      %p13 = scmp.ge.s32.totalorder %s12, 6
      %s22 = sphi 0, %s24
      %s25 = sphi 0, %s22
      %s26 = sphi 0, %s25
      %s42 = sphi 0, %s26
      %s46 = sphi 0, %s46
      %s48 = sphi 0, %s46
      %s49 = sphi 0, %s48
      %s63 = sphi 0, %s49
      %s67 = sphi 0, %s67
      %s69 = sphi 0, %s67
      %s70 = sphi 0, %s69
      %s84 = sphi 0, %s70
      %s90 = sphi 0, %s92
      %s93 = sphi 0, %s90
      %s94 = sphi 0, %s93
      %s110 = sphi 0, %s94
    $region4: #{head_forward.1} parent=1 // loop_header_branch
      %15 = sbr.rel (%p13) target = $region8
    $region5: #{head_forward.1} parent=1 // loop_body
      %s17 = ssub.s32 %s12, 1
      %s18 = ssub.s32 %s12, 2
      %s19 = sadd.s32 %s12, 1
      %s20 = ssub.s32 %s12, %s19
      %p21 = scmp.eq.s32.totalorder %s20, 0
      %s23 = sadd.s32 %s22, 1
      %s24 = scalar_select %p21, %s22, %s23
      %p27 = pneg %p21
      %p28 = scmp.eq.s32.totalorder %s12, 3
      %p29 = por %p27, %p28
      %p30 = scmp.ne.s32.totalorder %s22, %s25
      %p31 = scmp.eq.s32.totalorder %s12, 0
      %p32 = por %p30, %p31
      %p33 = scmp.ne.s32.totalorder %s22, %s25
      %p34 = scmp.eq.s32.totalorder %s17, 3
      %p35 = por %p33, %p34
      %p36 = scmp.ne.s32.totalorder %s25, %s26
      %p37 = scmp.eq.s32.totalorder %s17, 0
      %p38 = por %p36, %p37
      %p39 = scmp.ne.s32.totalorder %s25, %s26
      %p40 = scmp.eq.s32.totalorder %s18, 3
      %p41 = por %p39, %p40
      %p43 = scmp.ne.s32.totalorder %s26, %s42
      %p44 = scmp.eq.s32.totalorder %s18, 0
      %p45 = por %p43, %p44
      %s47 = sadd.s32 %s46, 1
      %p50 = scmp.eq.s32.totalorder %s12, 3
      %p51 = scmp.ne.s32.totalorder %s46, %s48
      %p52 = scmp.eq.s32.totalorder %s12, 0
      %p53 = por %p51, %p52
      %p54 = scmp.ne.s32.totalorder %s46, %s48
      %p55 = scmp.eq.s32.totalorder %s17, 3
      %p56 = por %p54, %p55
      %p57 = scmp.ne.s32.totalorder %s48, %s49
      %p58 = scmp.eq.s32.totalorder %s17, 0
      %p59 = por %p57, %p58
      %p60 = scmp.ne.s32.totalorder %s48, %s49
      %p61 = scmp.eq.s32.totalorder %s18, 3
      %p62 = por %p60, %p61
      %p64 = scmp.ne.s32.totalorder %s49, %s63
      %p65 = scmp.eq.s32.totalorder %s18, 0
      %p66 = por %p64, %p65
      %s68 = sadd.s32 %s67, 1
      %p71 = scmp.eq.s32.totalorder %s12, 3
      %p72 = scmp.ne.s32.totalorder %s67, %s69
      %p73 = scmp.eq.s32.totalorder %s12, 0
      %p74 = por %p72, %p73
      %p75 = scmp.ne.s32.totalorder %s67, %s69
      %p76 = scmp.eq.s32.totalorder %s17, 3
      %p77 = por %p75, %p76
      %p78 = scmp.ne.s32.totalorder %s69, %s70
      %p79 = scmp.eq.s32.totalorder %s17, 0
      %p80 = por %p78, %p79
      %p81 = scmp.ne.s32.totalorder %s69, %s70
      %p82 = scmp.eq.s32.totalorder %s18, 3
      %p83 = por %p81, %p82
      %p85 = scmp.ne.s32.totalorder %s70, %s84
      %p86 = scmp.eq.s32.totalorder %s18, 0
      %p87 = por %p85, %p86
      %s88 = ssub.s32 %s12, %s19
      %p89 = scmp.eq.s32.totalorder %s88, 0
      %s91 = sadd.s32 %s90, 1
      %s92 = scalar_select %p89, %s90, %s91
      %p95 = pneg %p89
      %p96 = scmp.eq.s32.totalorder %s12, 3
      %p97 = por %p95, %p96
      %p98 = scmp.ne.s32.totalorder %s90, %s93
      %p99 = scmp.eq.s32.totalorder %s12, 0
      %p100 = por %p98, %p99
      %p101 = scmp.ne.s32.totalorder %s90, %s93
      %p102 = scmp.eq.s32.totalorder %s17, 3
      %p103 = por %p101, %p102
      %p104 = scmp.ne.s32.totalorder %s93, %s94
      %p105 = scmp.eq.s32.totalorder %s17, 0
      %p106 = por %p104, %p105
      %p107 = scmp.ne.s32.totalorder %s93, %s94
      %p108 = scmp.eq.s32.totalorder %s18, 3
      %p109 = por %p107, %p108
      %p111 = scmp.ne.s32.totalorder %s94, %s110
      %p112 = scmp.eq.s32.totalorder %s18, 0
      %p113 = por %p111, %p112
      %p114 = scmp.le.s32.totalorder 1, %s12
      %p115 = scmp.lt.s32.totalorder %s12, 5
      %p116 = pnand %p114, %p115
      %p117 = pneg %p116
      // Predicated region
      $region9: #{head_forward.1} parent=5 // pred_check
        _
      $region10: #{head_forward.1} parent=5 // pred_check_branch
        %119 = sbr.rel (%p116) target = $region12
      $region11: #{head_forward.1} parent=5 // pred_region
        %s120 = ssub.s32 %s12, 1
        // Predicated region
        $region13: #{head_forward.1} parent=11 // pred_check
          %p121 = pneg %p59
        $region14: #{head_forward.1} parent=11 // pred_check_branch
          %123 = sbr.rel (%p121) target = $region16
        $region15: #{head_forward.1} parent=11 // pred_region
          _
        $region16: #{head_forward.1} parent=11 // pred_fallthru
          _
        // Predicated region
        $region17: #{head_forward.1} parent=11 // pred_check
          %p124 = pneg %p80
        $region18: #{head_forward.1} parent=11 // pred_check_branch
          %126 = sbr.rel (%p124) target = $region20
        $region19: #{head_forward.1} parent=11 // pred_region
          _
        $region20: #{head_forward.1} parent=11 // pred_fallthru
          _
      $region12: #{head_forward.1} parent=5 // pred_fallthru
        _
      %p127 = scmp.lt.s32.totalorder %s12, 4
      // Predicated region
      $region21: #{head_forward.1} parent=5 // pred_check
        %p128 = pneg %p127
      $region22: #{head_forward.1} parent=5 // pred_check_branch
        %130 = sbr.rel (%p128) target = $region24
      $region23: #{head_forward.1} parent=5 // pred_region
        // Predicated region
        $region25: #{head_forward.1} parent=23 // pred_check
          %p131 = pneg %p32
        $region26: #{head_forward.1} parent=23 // pred_check_branch
          %133 = sbr.rel (%p131) target = $region28
        $region27: #{head_forward.1} parent=23 // pred_region
          %p134 = scmp.lt.s32.totalorder %s12, 3
          %s135 = scalar_select %p134, %s12, 3
          %s136 = smul.addr %s135, 40
          %s137 = smul.addr %s136, 8
          %s138 = scalar_lea.vmem %s0, %s137
        $region28: #{head_forward.1} parent=23 // pred_fallthru
          _
      $region24: #{head_forward.1} parent=5 // pred_fallthru
        _
      %p139 = scmp.le.s32.totalorder 1, %s12
      %p140 = scmp.lt.s32.totalorder %s12, 5
      %p141 = pnand %p139, %p140
      %p142 = pneg %p141
      // Predicated region
      $region29: #{head_forward.1} parent=5 // pred_check
        _
      $region30: #{head_forward.1} parent=5 // pred_check_branch
        %144 = sbr.rel (%p141) target = $region32
      $region31: #{head_forward.1} parent=5 // pred_region
        %s145 = ssub.s32 %s12, 1
        %p146 = scmp.lt.s32.totalorder %s17, 3
        %s147 = scalar_select %p146, %s17, 3
        %s148 = smul.addr %s147, 40
        %s149 = smul.addr %s148, 8
        %s150 = scalar_lea.vmem %s0, %s149
        %p151 = pneg %p38
        %p152 = pneg %p35
        %p153 = pneg %p59
        %p154 = pneg %p56
        %p155 = pneg %p80
        %p156 = pneg %p77
        %p157 = pneg %p106
        %p158 = pneg %p103
        %s159 = sand.u32 %s93, 1
        %s160 = scalar_lea.sflag [#allocation3], %s159
        %s161 = sand.u32 %s93, 1
        %s162 = smul.addr %s161, 64
        %s163 = scalar_lea.vmem [#allocation2], %s162
        %p164 = scmp.lt.s32.totalorder %s17, 3
        %s165 = scalar_select %p164, %s17, 3
        %s166 = smul.addr %s165, 40
        %s167 = smul.addr %s166, 8
        %s168 = scalar_lea.vmem %s0, %s167
        %v169 = vld [vmem:[%s168] sm:$0xff]
        %v170 = vld [vmem:[%s168 + $0x8] sm:$0xff]
        %v171 = vld [vmem:[%s168 + $0x10] sm:$0xff]
        %v172 = vld [vmem:[%s168 + $0x18] sm:$0xff]
        %v173 = vld [vmem:[%s168 + $0x20] sm:$0xff]
        %v174 = vld [vmem:[%s168 + $0x28] sm:$0xff]
        %v175 = vld [vmem:[%s168 + $0x30] sm:$0xff]
        %v176 = vld [vmem:[%s168 + $0x38] sm:$0xff]
        %v177 = vld [vmem:[%s168 + $0x40] sm:$0xff]
        %v178 = vld [vmem:[%s168 + $0x48] sm:$0xff]
        %v179 = vld [vmem:[%s168 + $0x50] sm:$0xff]
        %v180 = vld [vmem:[%s168 + $0x58] sm:$0xff]
        %v181 = vld [vmem:[%s168 + $0x60] sm:$0xff]
        %v182 = vld [vmem:[%s168 + $0x68] sm:$0xff]
        %v183 = vld [vmem:[%s168 + $0x70] sm:$0xff]
        %v184 = vld [vmem:[%s168 + $0x78] sm:$0xff]
        %v185 = vld [vmem:[%s168 + $0x80] sm:$0xff]
        %v186 = vld [vmem:[%s168 + $0x88] sm:$0xff]
        %v187 = vld [vmem:[%s168 + $0x90] sm:$0xff]
        %v188 = vld [vmem:[%s168 + $0x98] sm:$0xff]
        %v189 = vld [vmem:[%s168 + $0xa0] sm:$0xff]
        %v190 = vld [vmem:[%s168 + $0xa8] sm:$0xff]
        %v191 = vld [vmem:[%s168 + $0xb0] sm:$0xff]
        %v192 = vld [vmem:[%s168 + $0xb8] sm:$0xff]
        %v193 = vld [vmem:[%s168 + $0xc0] sm:$0xff]
        %v194 = vld [vmem:[%s168 + $0xc8] sm:$0xff]
        %v195 = vld [vmem:[%s168 + $0xd0] sm:$0xff]
        %v196 = vld [vmem:[%s168 + $0xd8] sm:$0xff]
        %v197 = vld [vmem:[%s168 + $0xe0] sm:$0xff]
        %v198 = vld [vmem:[%s168 + $0xe8] sm:$0xff]
        %v199 = vld [vmem:[%s168 + $0xf0] sm:$0xff]
        %v200 = vld [vmem:[%s168 + $0xf8] sm:$0xff]
        %v201 = vld [vmem:[%s168 + $0x100] sm:$0xff]
        %v202 = vld [vmem:[%s168 + $0x108] sm:$0xff]
        %v203 = vld [vmem:[%s168 + $0x110] sm:$0xff]
        %v204 = vld [vmem:[%s168 + $0x118] sm:$0xff]
        %v205 = vld [vmem:[%s168 + $0x120] sm:$0xff]
        %v206 = vld [vmem:[%s168 + $0x128] sm:$0xff]
        %v207 = vld [vmem:[%s168 + $0x130] sm:$0xff]
        %v208 = vld [vmem:[%s168 + $0x138] sm:$0xff]
        %v209 = vld [vmem:[%s1] sm:$0xff]
        %v210 = vld [vmem:[%s1 + $0x8] sm:$0xff]
        %v211 = vld [vmem:[%s1 + $0x10] sm:$0xff]
        %v212 = vld [vmem:[%s1 + $0x18] sm:$0xff]
        %v213 = vld [vmem:[%s1 + $0x20] sm:$0xff]
        %v214 = vld [vmem:[%s1 + $0x28] sm:$0xff]
        %v215 = vld [vmem:[%s1 + $0x30] sm:$0xff]
        %v216 = vld [vmem:[%s1 + $0x38] sm:$0xff]
        %v217 = vld [vmem:[%s1 + $0x40] sm:$0xff]
        %v218 = vld [vmem:[%s1 + $0x48] sm:$0xff]
        %v219 = vld [vmem:[%s1 + $0x50] sm:$0xff]
        %v220 = vld [vmem:[%s1 + $0x58] sm:$0xff]
        %v221 = vld [vmem:[%s1 + $0x60] sm:$0xff]
        %v222 = vld [vmem:[%s1 + $0x68] sm:$0xff]
        %v223 = vld [vmem:[%s1 + $0x70] sm:$0xff]
        %v224 = vld [vmem:[%s1 + $0x78] sm:$0xff]
        %v225 = vld [vmem:[%s1 + $0x80] sm:$0xff]
        %v226 = vld [vmem:[%s1 + $0x88] sm:$0xff]
        %v227 = vld [vmem:[%s1 + $0x90] sm:$0xff]
        %v228 = vld [vmem:[%s1 + $0x98] sm:$0xff]
        %v229 = vld [vmem:[%s1 + $0xa0] sm:$0xff]
        %v230 = vld [vmem:[%s1 + $0xa8] sm:$0xff]
        %v231 = vld [vmem:[%s1 + $0xb0] sm:$0xff]
        %v232 = vld [vmem:[%s1 + $0xb8] sm:$0xff]
        %v233 = vld [vmem:[%s1 + $0xc0] sm:$0xff]
        %v234 = vld [vmem:[%s1 + $0xc8] sm:$0xff]
        %v235 = vld [vmem:[%s1 + $0xd0] sm:$0xff]
        %v236 = vld [vmem:[%s1 + $0xd8] sm:$0xff]
        %v237 = vld [vmem:[%s1 + $0xe0] sm:$0xff]
        %v238 = vld [vmem:[%s1 + $0xe8] sm:$0xff]
        %v239 = vld [vmem:[%s1 + $0xf0] sm:$0xff]
        %v240 = vld [vmem:[%s1 + $0xf8] sm:$0xff]
        %v241 = vld [vmem:[%s1 + $0x100] sm:$0xff]
        %v242 = vld [vmem:[%s1 + $0x108] sm:$0xff]
        %v243 = vld [vmem:[%s1 + $0x110] sm:$0xff]
        %v244 = vld [vmem:[%s1 + $0x118] sm:$0xff]
        %v245 = vld [vmem:[%s1 + $0x120] sm:$0xff]
        %v246 = vld [vmem:[%s1 + $0x128] sm:$0xff]
        %v247 = vld [vmem:[%s1 + $0x130] sm:$0xff]
        %v248 = vld [vmem:[%s1 + $0x138] sm:$0xff]
        %v249 = vld [vmem:[%s1 + $0x140] sm:$0xff]
        %v250 = vld [vmem:[%s1 + $0x148] sm:$0xff]
        %v251 = vld [vmem:[%s1 + $0x150] sm:$0xff]
        %v252 = vld [vmem:[%s1 + $0x158] sm:$0xff]
        %v253 = vld [vmem:[%s1 + $0x160] sm:$0xff]
        %v254 = vld [vmem:[%s1 + $0x168] sm:$0xff]
        %v255 = vld [vmem:[%s1 + $0x170] sm:$0xff]
        %v256 = vld [vmem:[%s1 + $0x178] sm:$0xff]
        %v257 = vld [vmem:[%s1 + $0x180] sm:$0xff]
        %v258 = vld [vmem:[%s1 + $0x188] sm:$0xff]
        %v259 = vld [vmem:[%s1 + $0x190] sm:$0xff]
        %v260 = vld [vmem:[%s1 + $0x198] sm:$0xff]
        %v261 = vld [vmem:[%s1 + $0x1a0] sm:$0xff]
        %v262 = vld [vmem:[%s1 + $0x1a8] sm:$0xff]
        %v263 = vld [vmem:[%s1 + $0x1b0] sm:$0xff]
        %v264 = vld [vmem:[%s1 + $0x1b8] sm:$0xff]
        %v265 = vld [vmem:[%s1 + $0x1c0] sm:$0xff]
        %v266 = vld [vmem:[%s1 + $0x1c8] sm:$0xff]
        %v267 = vld [vmem:[%s1 + $0x1d0] sm:$0xff]
        %v268 = vld [vmem:[%s1 + $0x1d8] sm:$0xff]
        %v269 = vld [vmem:[%s1 + $0x1e0] sm:$0xff]
        %v270 = vld [vmem:[%s1 + $0x1e8] sm:$0xff]
        %v271 = vld [vmem:[%s1 + $0x1f0] sm:$0xff]
        %v272 = vld [vmem:[%s1 + $0x1f8] sm:$0xff]
        %v273 = vld [vmem:[%s1 + $0x200] sm:$0xff]
        %v274 = vld [vmem:[%s1 + $0x208] sm:$0xff]
        %v275 = vld [vmem:[%s1 + $0x210] sm:$0xff]
        %v276 = vld [vmem:[%s1 + $0x218] sm:$0xff]
        %v277 = vld [vmem:[%s1 + $0x220] sm:$0xff]
        %v278 = vld [vmem:[%s1 + $0x228] sm:$0xff]
        %v279 = vld [vmem:[%s1 + $0x230] sm:$0xff]
        %v280 = vld [vmem:[%s1 + $0x238] sm:$0xff]
        %v281 = vld [vmem:[%s1 + $0x240] sm:$0xff]
        %v282 = vld [vmem:[%s1 + $0x248] sm:$0xff]
        %v283 = vld [vmem:[%s1 + $0x250] sm:$0xff]
        %v284 = vld [vmem:[%s1 + $0x258] sm:$0xff]
        %v285 = vld [vmem:[%s1 + $0x260] sm:$0xff]
        %v286 = vld [vmem:[%s1 + $0x268] sm:$0xff]
        %v287 = vld [vmem:[%s1 + $0x270] sm:$0xff]
        %v288 = vld [vmem:[%s1 + $0x278] sm:$0xff]
        %v289 = vld [vmem:[%s1 + $0x280] sm:$0xff]
        %v290 = vld [vmem:[%s1 + $0x288] sm:$0xff]
        %v291 = vld [vmem:[%s1 + $0x290] sm:$0xff]
        %v292 = vld [vmem:[%s1 + $0x298] sm:$0xff]
        %v293 = vld [vmem:[%s1 + $0x2a0] sm:$0xff]
        %v294 = vld [vmem:[%s1 + $0x2a8] sm:$0xff]
        %v295 = vld [vmem:[%s1 + $0x2b0] sm:$0xff]
        %v296 = vld [vmem:[%s1 + $0x2b8] sm:$0xff]
        %v297 = vld [vmem:[%s1 + $0x2c0] sm:$0xff]
        %v298 = vld [vmem:[%s1 + $0x2c8] sm:$0xff]
        %v299 = vld [vmem:[%s1 + $0x2d0] sm:$0xff]
        %v300 = vld [vmem:[%s1 + $0x2d8] sm:$0xff]
        %v301 = vld [vmem:[%s1 + $0x2e0] sm:$0xff]
        %v302 = vld [vmem:[%s1 + $0x2e8] sm:$0xff]
        %v303 = vld [vmem:[%s1 + $0x2f0] sm:$0xff]
        %v304 = vld [vmem:[%s1 + $0x2f8] sm:$0xff]
        %v305 = vld [vmem:[%s1 + $0x300] sm:$0xff]
        %v306 = vld [vmem:[%s1 + $0x308] sm:$0xff]
        %v307 = vld [vmem:[%s1 + $0x310] sm:$0xff]
        %v308 = vld [vmem:[%s1 + $0x318] sm:$0xff]
        %v309 = vld [vmem:[%s1 + $0x320] sm:$0xff]
        %v310 = vld [vmem:[%s1 + $0x328] sm:$0xff]
        %v311 = vld [vmem:[%s1 + $0x330] sm:$0xff]
        %v312 = vld [vmem:[%s1 + $0x338] sm:$0xff]
        %v313 = vld [vmem:[%s1 + $0x340] sm:$0xff]
        %v314 = vld [vmem:[%s1 + $0x348] sm:$0xff]
        %v315 = vld [vmem:[%s1 + $0x350] sm:$0xff]
        %v316 = vld [vmem:[%s1 + $0x358] sm:$0xff]
        %v317 = vld [vmem:[%s1 + $0x360] sm:$0xff]
        %v318 = vld [vmem:[%s1 + $0x368] sm:$0xff]
        %v319 = vld [vmem:[%s1 + $0x370] sm:$0xff]
        %v320 = vld [vmem:[%s1 + $0x378] sm:$0xff]
        %v321 = vld [vmem:[%s1 + $0x380] sm:$0xff]
        %v322 = vld [vmem:[%s1 + $0x388] sm:$0xff]
        %v323 = vld [vmem:[%s1 + $0x390] sm:$0xff]
        %v324 = vld [vmem:[%s1 + $0x398] sm:$0xff]
        %v325 = vld [vmem:[%s1 + $0x3a0] sm:$0xff]
        %v326 = vld [vmem:[%s1 + $0x3a8] sm:$0xff]
        %v327 = vld [vmem:[%s1 + $0x3b0] sm:$0xff]
        %v328 = vld [vmem:[%s1 + $0x3b8] sm:$0xff]
        %v329 = vld [vmem:[%s1 + $0x3c0] sm:$0xff]
        %v330 = vld [vmem:[%s1 + $0x3c8] sm:$0xff]
        %v331 = vld [vmem:[%s1 + $0x3d0] sm:$0xff]
        %v332 = vld [vmem:[%s1 + $0x3d8] sm:$0xff]
        %v333 = vld [vmem:[%s1 + $0x3e0] sm:$0xff]
        %v334 = vld [vmem:[%s1 + $0x3e8] sm:$0xff]
        %v335 = vld [vmem:[%s1 + $0x3f0] sm:$0xff]
        %v336 = vld [vmem:[%s1 + $0x3f8] sm:$0xff]
        %v337 = vld [vmem:[%s1 + $0x400] sm:$0xf]
        %v338 = vld [vmem:[%s1 + $0x408] sm:$0xf]
        %v339 = vld [vmem:[%s2] sm:$0x3]
        %v341 = vlaneseq
        %v342 = vshrl.u32 %v341, 7
        %v343 = vsub.s32 0, %v342
        %v344 = vrot.slane %v339, %v343
        %v345 = vlaneseq
        %v346 = vshrl.u32 %v345, 7
        %v347 = vsub.s32 1, %v346
        %v348 = vrot.slane %v339, %v347
        %vm351 = vcmask 31744
        %v353 = vsel %vm351, %v173, 0
        %v356 = vsel %vm351, %v178, 0
        %v359 = vsel %vm351, %v183, 0
        %v362 = vsel %vm351, %v188, 0
        %v365 = vsel %vm351, %v193, 0
        %v368 = vsel %vm351, %v198, 0
        %v371 = vsel %vm351, %v203, 0
        %v374 = vsel %vm351, %v208, 0
        %vm376 = vcmask 1043456
        %v378 = vsel %vm376, %v337, 0
        %v381 = vsel %vm376, %v338, 0
        %383 = vmatprep.subr.mxu0 %v210
        %384 = vmatpush1.msra.mxu0 %v209
        %385 = vmatprep.subr.mxu0 %v212
        %386 = vmatpush1.msra.mxu0 %v211
        %387 = vmatprep.subr.mxu0 %v214
        %388 = vmatpush1.msra.mxu0 %v213
        %389 = vmatprep.subr.mxu0 %v216
        %390 = vmatpush1.msra.mxu0 %v215
        %391 = vmatprep.subr.mxu0 %v218
        %392 = vmatpush1.msra.mxu0 %v217
        %393 = vmatprep.subr.mxu0 %v220
        %394 = vmatpush1.msra.mxu0 %v219
        %395 = vmatprep.subr.mxu0 %v222
        %396 = vmatpush1.msra.mxu0 %v221
        %397 = vmatprep.subr.mxu0 %v224
        %398 = vmatpush1.msra.mxu0 %v223
        %399 = vmatprep.subr.mxu0 %v226
        %400 = vmatpush1.msra.mxu0 %v225
        %401 = vmatprep.subr.mxu0 %v228
        %402 = vmatpush1.msra.mxu0 %v227
        %403 = vmatprep.subr.mxu0 %v230
        %404 = vmatpush1.msra.mxu0 %v229
        %405 = vmatprep.subr.mxu0 %v232
        %406 = vmatpush1.msra.mxu0 %v231
        %407 = vmatprep.subr.mxu0 %v234
        %408 = vmatpush1.msra.mxu0 %v233
        %409 = vmatprep.subr.mxu0 %v236
        %410 = vmatpush1.msra.mxu0 %v235
        %411 = vmatprep.subr.mxu0 %v238
        %412 = vmatpush1.msra.mxu0 %v237
        %413 = vmatprep.subr.mxu0 %v240
        %414 = vmatpush1.msra.mxu0 %v239
        %415 = vmatprep.subr.mxu0 %v242
        %416 = vmatpush1.msra.mxu0 %v241
        %417 = vmatprep.subr.mxu0 %v244
        %418 = vmatpush1.msra.mxu0 %v243
        %419 = vmatprep.subr.mxu0 %v246
        %420 = vmatpush1.msra.mxu0 %v245
        %421 = vmatprep.subr.mxu0 %v248
        %422 = vmatpush1.msra.mxu0 %v247
        %423 = vmatprep.subr.mxu0 %v250
        %424 = vmatpush1.msra.mxu0 %v249
        %425 = vmatprep.subr.mxu0 %v252
        %426 = vmatpush1.msra.mxu0 %v251
        %427 = vmatprep.subr.mxu0 %v254
        %428 = vmatpush1.msra.mxu0 %v253
        %429 = vmatprep.subr.mxu0 %v256
        %430 = vmatpush1.msra.mxu0 %v255
        %431 = vmatprep.subr.mxu0 %v258
        %432 = vmatpush1.msra.mxu0 %v257
        %433 = vmatprep.subr.mxu0 %v260
        %434 = vmatpush1.msra.mxu0 %v259
        %435 = vmatprep.subr.mxu0 %v262
        %436 = vmatpush1.msra.mxu0 %v261
        %437 = vmatprep.subr.mxu0 %v264
        %438 = vmatpush1.msra.mxu0 %v263
        %439 = vmatprep.subr.mxu0 %v266
        %440 = vmatpush1.msra.mxu0 %v265
        %441 = vmatprep.subr.mxu0 %v268
        %442 = vmatpush1.msra.mxu0 %v267
        %443 = vmatprep.subr.mxu0 %v270
        %444 = vmatpush1.msra.mxu0 %v269
        %445 = vmatprep.subr.mxu0 %v272
        %446 = vmatpush1.msra.mxu0 %v271
        %447 = vmatprep.mubr.f32.mxu0 %v170
        %448 = vmatmul.mubr.f32.gmra.mrb[0].mxu0 %v169
        %v449 = vpop.f32.mrb[0].mxu0
        %v450 = vadd.f32 %v344, %v449
        %v451 = vpop.f32.mrb[0].mxu0
        %v452 = vadd.f32 %v348, %v451
        %453 = vmatprep.mubr.f32.mxu0 %v175
        %454 = vmatmul.mubr.f32.gmra.mrb[0].mxu0 %v174
        %v455 = vpop.f32.mrb[0].mxu0
        %v456 = vadd.f32 %v344, %v455
        %v457 = vpop.f32.mrb[0].mxu0
        %v458 = vadd.f32 %v348, %v457
        %459 = vmatprep.mubr.f32.mxu0 %v180
        %460 = vmatmul.mubr.f32.gmra.mrb[0].mxu0 %v179
        %v461 = vpop.f32.mrb[0].mxu0
        %v462 = vadd.f32 %v344, %v461
        %v463 = vpop.f32.mrb[0].mxu0
        %v464 = vadd.f32 %v348, %v463
        %465 = vmatprep.mubr.f32.mxu0 %v185
        %466 = vmatmul.mubr.f32.gmra.mrb[0].mxu0 %v184
        %v467 = vpop.f32.mrb[0].mxu0
        %v468 = vadd.f32 %v344, %v467
        %v469 = vpop.f32.mrb[0].mxu0
        %v470 = vadd.f32 %v348, %v469
        %471 = vmatprep.mubr.f32.mxu0 %v190
        %472 = vmatmul.mubr.f32.gmra.mrb[0].mxu0 %v189
        %v473 = vpop.f32.mrb[0].mxu0
        %v474 = vadd.f32 %v344, %v473
        %v475 = vpop.f32.mrb[0].mxu0
        %v476 = vadd.f32 %v348, %v475
        %477 = vmatprep.mubr.f32.mxu0 %v195
        %478 = vmatmul.mubr.f32.gmra.mrb[0].mxu0 %v194
        %v479 = vpop.f32.mrb[0].mxu0
        %v480 = vadd.f32 %v344, %v479
        %v481 = vpop.f32.mrb[0].mxu0
        %v482 = vadd.f32 %v348, %v481
        %483 = vmatprep.mubr.f32.mxu0 %v200
        %484 = vmatmul.mubr.f32.gmra.mrb[0].mxu0 %v199
        %v485 = vpop.f32.mrb[0].mxu0
        %v486 = vadd.f32 %v344, %v485
        %v487 = vpop.f32.mrb[0].mxu0
        %v488 = vadd.f32 %v348, %v487
        %489 = vmatprep.mubr.f32.mxu0 %v205
        %490 = vmatmul.mubr.f32.gmra.mrb[0].mxu0 %v204
        %v491 = vpop.f32.mrb[0].mxu0
        %v492 = vadd.f32 %v344, %v491
        %v493 = vpop.f32.mrb[0].mxu0
        %v494 = vadd.f32 %v348, %v493
        %495 = vdwg.mxu0
        %496 = vmatprep.subr.mxu0 %v274
        %497 = vmatpush1.msra.mxu0 %v273
        %498 = vmatprep.subr.mxu0 %v276
        %499 = vmatpush1.msra.mxu0 %v275
        %500 = vmatprep.subr.mxu0 %v278
        %501 = vmatpush1.msra.mxu0 %v277
        %502 = vmatprep.subr.mxu0 %v280
        %503 = vmatpush1.msra.mxu0 %v279
        %504 = vmatprep.subr.mxu0 %v282
        %505 = vmatpush1.msra.mxu0 %v281
        %506 = vmatprep.subr.mxu0 %v284
        %507 = vmatpush1.msra.mxu0 %v283
        %508 = vmatprep.subr.mxu0 %v286
        %509 = vmatpush1.msra.mxu0 %v285
        %510 = vmatprep.subr.mxu0 %v288
        %511 = vmatpush1.msra.mxu0 %v287
        %512 = vmatprep.subr.mxu0 %v290
        %513 = vmatpush1.msra.mxu0 %v289
        %514 = vmatprep.subr.mxu0 %v292
        %515 = vmatpush1.msra.mxu0 %v291
        %516 = vmatprep.subr.mxu0 %v294
        %517 = vmatpush1.msra.mxu0 %v293
        %518 = vmatprep.subr.mxu0 %v296
        %519 = vmatpush1.msra.mxu0 %v295
        %520 = vmatprep.subr.mxu0 %v298
        %521 = vmatpush1.msra.mxu0 %v297
        %522 = vmatprep.subr.mxu0 %v300
        %523 = vmatpush1.msra.mxu0 %v299
        %524 = vmatprep.subr.mxu0 %v302
        %525 = vmatpush1.msra.mxu0 %v301
        %526 = vmatprep.subr.mxu0 %v304
        %527 = vmatpush1.msra.mxu0 %v303
        %528 = vmatprep.subr.mxu0 %v306
        %529 = vmatpush1.msra.mxu0 %v305
        %530 = vmatprep.subr.mxu0 %v308
        %531 = vmatpush1.msra.mxu0 %v307
        %532 = vmatprep.subr.mxu0 %v310
        %533 = vmatpush1.msra.mxu0 %v309
        %534 = vmatprep.subr.mxu0 %v312
        %535 = vmatpush1.msra.mxu0 %v311
        %536 = vmatprep.subr.mxu0 %v314
        %537 = vmatpush1.msra.mxu0 %v313
        %538 = vmatprep.subr.mxu0 %v316
        %539 = vmatpush1.msra.mxu0 %v315
        %540 = vmatprep.subr.mxu0 %v318
        %541 = vmatpush1.msra.mxu0 %v317
        %542 = vmatprep.subr.mxu0 %v320
        %543 = vmatpush1.msra.mxu0 %v319
        %544 = vmatprep.subr.mxu0 %v322
        %545 = vmatpush1.msra.mxu0 %v321
        %546 = vmatprep.subr.mxu0 %v324
        %547 = vmatpush1.msra.mxu0 %v323
        %548 = vmatprep.subr.mxu0 %v326
        %549 = vmatpush1.msra.mxu0 %v325
        %550 = vmatprep.subr.mxu0 %v328
        %551 = vmatpush1.msra.mxu0 %v327
        %552 = vmatprep.subr.mxu0 %v330
        %553 = vmatpush1.msra.mxu0 %v329
        %554 = vmatprep.subr.mxu0 %v332
        %555 = vmatpush1.msra.mxu0 %v331
        %556 = vmatprep.subr.mxu0 %v334
        %557 = vmatpush1.msra.mxu0 %v333
        %558 = vmatprep.subr.mxu0 %v336
        %559 = vmatpush1.msra.mxu0 %v335
        %560 = vmatprep.mubr.f32.mxu0 %v172
        %561 = vmatmul.mubr.f32.gmra.mrb[0].mxu0 %v171
        %v562 = vpop.f32.mrb[0].mxu0
        %v563 = vadd.f32 %v450, %v562
        %v564 = vpop.f32.mrb[0].mxu0
        %v565 = vadd.f32 %v452, %v564
        %566 = vmatprep.mubr.f32.mxu0 %v177
        %567 = vmatmul.mubr.f32.gmra.mrb[0].mxu0 %v176
        %v568 = vpop.f32.mrb[0].mxu0
        %v569 = vadd.f32 %v456, %v568
        %v570 = vpop.f32.mrb[0].mxu0
        %v571 = vadd.f32 %v458, %v570
        %572 = vmatprep.mubr.f32.mxu0 %v182
        %573 = vmatmul.mubr.f32.gmra.mrb[0].mxu0 %v181
        %v574 = vpop.f32.mrb[0].mxu0
        %v575 = vadd.f32 %v462, %v574
        %v576 = vpop.f32.mrb[0].mxu0
        %v577 = vadd.f32 %v464, %v576
        %578 = vmatprep.mubr.f32.mxu0 %v187
        %579 = vmatmul.mubr.f32.gmra.mrb[0].mxu0 %v186
        %v580 = vpop.f32.mrb[0].mxu0
        %v581 = vadd.f32 %v468, %v580
        %v582 = vpop.f32.mrb[0].mxu0
        %v583 = vadd.f32 %v470, %v582
        %584 = vmatprep.mubr.f32.mxu0 %v192
        %585 = vmatmul.mubr.f32.gmra.mrb[0].mxu0 %v191
        %v586 = vpop.f32.mrb[0].mxu0
        %v587 = vadd.f32 %v474, %v586
        %v588 = vpop.f32.mrb[0].mxu0
        %v589 = vadd.f32 %v476, %v588
        %590 = vmatprep.mubr.f32.mxu0 %v197
        %591 = vmatmul.mubr.f32.gmra.mrb[0].mxu0 %v196
        %v592 = vpop.f32.mrb[0].mxu0
        %v593 = vadd.f32 %v480, %v592
        %v594 = vpop.f32.mrb[0].mxu0
        %v595 = vadd.f32 %v482, %v594
        %596 = vmatprep.mubr.f32.mxu0 %v202
        %597 = vmatmul.mubr.f32.gmra.mrb[0].mxu0 %v201
        %v598 = vpop.f32.mrb[0].mxu0
        %v599 = vadd.f32 %v486, %v598
        %v600 = vpop.f32.mrb[0].mxu0
        %v601 = vadd.f32 %v488, %v600
        %602 = vmatprep.mubr.f32.mxu0 %v207
        %603 = vmatmul.mubr.f32.gmra.mrb[0].mxu0 %v206
        %v604 = vpop.f32.mrb[0].mxu0
        %v605 = vadd.f32 %v492, %v604
        %v606 = vpop.f32.mrb[0].mxu0
        %v607 = vadd.f32 %v494, %v606
        %608 = vdwg.mxu0
        %609 = vmatprep.subr.mxu0 %v381
        %610 = vmatpush1.msra.mxu0 %v378
        %611 = vmatprep.subr.mxu0 0.0
        %612 = vmatpush1.msra.mxu0 0.0
        %613 = vmatprep.subr.mxu0 0.0
        %614 = vmatpush1.msra.mxu0 0.0
        %615 = vmatprep.subr.mxu0 0.0
        %616 = vmatpush1.msra.mxu0 0.0
        %617 = vmatprep.subr.mxu0 0.0
        %618 = vmatpush1.msra.mxu0 0.0
        %619 = vmatprep.subr.mxu0 0.0
        %620 = vmatpush1.msra.mxu0 0.0
        %621 = vmatprep.subr.mxu0 0.0
        %622 = vmatpush1.msra.mxu0 0.0
        %623 = vmatprep.subr.mxu0 0.0
        %624 = vmatpush1.msra.mxu0 0.0
        %625 = vmatprep.subr.mxu0 0.0
        %626 = vmatpush1.msra.mxu0 0.0
        %627 = vmatprep.subr.mxu0 0.0
        %628 = vmatpush1.msra.mxu0 0.0
        %629 = vmatprep.subr.mxu0 0.0
        %630 = vmatpush1.msra.mxu0 0.0
        %631 = vmatprep.subr.mxu0 0.0
        %632 = vmatpush1.msra.mxu0 0.0
        %633 = vmatprep.subr.mxu0 0.0
        %634 = vmatpush1.msra.mxu0 0.0
        %635 = vmatprep.subr.mxu0 0.0
        %636 = vmatpush1.msra.mxu0 0.0
        %637 = vmatprep.subr.mxu0 0.0
        %638 = vmatpush1.msra.mxu0 0.0
        %639 = vmatprep.subr.mxu0 0.0
        %640 = vmatpush1.msra.mxu0 0.0
        %641 = vmatprep.subr.mxu0 0.0
        %642 = vmatpush1.msra.mxu0 0.0
        %643 = vmatprep.subr.mxu0 0.0
        %644 = vmatpush1.msra.mxu0 0.0
        %645 = vmatprep.subr.mxu0 0.0
        %646 = vmatpush1.msra.mxu0 0.0
        %647 = vmatprep.subr.mxu0 0.0
        %648 = vmatpush1.msra.mxu0 0.0
        %649 = vmatprep.subr.mxu0 0.0
        %650 = vmatpush1.msra.mxu0 0.0
        %651 = vmatprep.subr.mxu0 0.0
        %652 = vmatpush1.msra.mxu0 0.0
        %653 = vmatprep.subr.mxu0 0.0
        %654 = vmatpush1.msra.mxu0 0.0
        %655 = vmatprep.subr.mxu0 0.0
        %656 = vmatpush1.msra.mxu0 0.0
        %657 = vmatprep.subr.mxu0 0.0
        %658 = vmatpush1.msra.mxu0 0.0
        %659 = vmatprep.subr.mxu0 0.0
        %660 = vmatpush1.msra.mxu0 0.0
        %661 = vmatprep.subr.mxu0 0.0
        %662 = vmatpush1.msra.mxu0 0.0
        %663 = vmatprep.subr.mxu0 0.0
        %664 = vmatpush1.msra.mxu0 0.0
        %665 = vmatprep.subr.mxu0 0.0
        %666 = vmatpush1.msra.mxu0 0.0
        %667 = vmatprep.subr.mxu0 0.0
        %668 = vmatpush1.msra.mxu0 0.0
        %669 = vmatprep.subr.mxu0 0.0
        %670 = vmatpush1.msra.mxu0 0.0
        %671 = vmatprep.subr.mxu0 0.0
        %672 = vmatpush1.msra.mxu0 0.0
        %673 = vmatprep.mubr.f32.mxu0 0.0
        %674 = vmatmul.mubr.f32.gmra.mrb[0].mxu0 %v353
        %v675 = vpop.f32.mrb[0].mxu0
        %v676 = vadd.f32 %v563, %v675
        %v677 = vpop.f32.mrb[0].mxu0
        %v678 = vadd.f32 %v565, %v677
        %679 = vmatprep.mubr.f32.mxu0 0.0
        %680 = vmatmul.mubr.f32.gmra.mrb[0].mxu0 %v356
        %v681 = vpop.f32.mrb[0].mxu0
        %v682 = vadd.f32 %v569, %v681
        %v683 = vpop.f32.mrb[0].mxu0
        %v684 = vadd.f32 %v571, %v683
        %685 = vmatprep.mubr.f32.mxu0 0.0
        %686 = vmatmul.mubr.f32.gmra.mrb[0].mxu0 %v359
        %v687 = vpop.f32.mrb[0].mxu0
        %v688 = vadd.f32 %v575, %v687
        %v689 = vpop.f32.mrb[0].mxu0
        %v690 = vadd.f32 %v577, %v689
        %691 = vmatprep.mubr.f32.mxu0 0.0
        %692 = vmatmul.mubr.f32.gmra.mrb[0].mxu0 %v362
        %v693 = vpop.f32.mrb[0].mxu0
        %v694 = vadd.f32 %v581, %v693
        %v695 = vpop.f32.mrb[0].mxu0
        %v696 = vadd.f32 %v583, %v695
        %697 = vmatprep.mubr.f32.mxu0 0.0
        %698 = vmatmul.mubr.f32.gmra.mrb[0].mxu0 %v365
        %v699 = vpop.f32.mrb[0].mxu0
        %v700 = vadd.f32 %v587, %v699
        %v701 = vpop.f32.mrb[0].mxu0
        %v702 = vadd.f32 %v589, %v701
        %703 = vmatprep.mubr.f32.mxu0 0.0
        %704 = vmatmul.mubr.f32.gmra.mrb[0].mxu0 %v368
        %v705 = vpop.f32.mrb[0].mxu0
        %v706 = vadd.f32 %v593, %v705
        %v707 = vpop.f32.mrb[0].mxu0
        %v708 = vadd.f32 %v595, %v707
        %709 = vmatprep.mubr.f32.mxu0 0.0
        %710 = vmatmul.mubr.f32.gmra.mrb[0].mxu0 %v371
        %v711 = vpop.f32.mrb[0].mxu0
        %v712 = vadd.f32 %v599, %v711
        %v713 = vpop.f32.mrb[0].mxu0
        %v714 = vadd.f32 %v601, %v713
        %715 = vmatprep.mubr.f32.mxu0 0.0
        %716 = vmatmul.mubr.f32.gmra.mrb[0].mxu0 %v374
        %v717 = vpop.f32.mrb[0].mxu0
        %v718 = vadd.f32 %v605, %v717
        %v719 = vpop.f32.mrb[0].mxu0
        %v720 = vadd.f32 %v607, %v719
        %721 = vdwg.mxu0
        %730 = vrot.lane.b32.xlu0 %v676, 64
        %v731 = vpop.permute.xlu0 %730
        %732 = vrot.lane.b32.xlu0 %v682, 64
        %v733 = vpop.permute.xlu0 %732
        %734 = vrot.lane.b32.xlu0 %v688, 64
        %v735 = vpop.permute.xlu0 %734
        %736 = vrot.lane.b32.xlu0 %v694, 64
        %v737 = vpop.permute.xlu0 %736
        %738 = vrot.lane.b32.xlu0 %v700, 64
        %v739 = vpop.permute.xlu0 %738
        %740 = vrot.lane.b32.xlu0 %v706, 64
        %v741 = vpop.permute.xlu0 %740
        %742 = vrot.lane.b32.xlu0 %v712, 64
        %v743 = vpop.permute.xlu0 %742
        %744 = vrot.lane.b32.xlu0 %v718, 64
        %v745 = vpop.permute.xlu0 %744
        %vm746 = vcmask 523264
        %v747 = vsel %vm746, %v676, 0
        %v749 = vsel %vm746, %v682, 0
        %v751 = vsel %vm746, %v688, 0
        %v753 = vsel %vm746, %v694, 0
        %v755 = vsel %vm746, %v700, 0
        %v757 = vsel %vm746, %v706, 0
        %v759 = vsel %vm746, %v712, 0
        %v761 = vsel %vm746, %v718, 0
        %v763 = vsel %vm746, %v731, 0
        %v765 = vsel %vm746, %v733, 0
        %v767 = vsel %vm746, %v735, 0
        %v769 = vsel %vm746, %v737, 0
        %v771 = vsel %vm746, %v739, 0
        %v773 = vsel %vm746, %v741, 0
        %v775 = vsel %vm746, %v743, 0
        %v777 = vsel %vm746, %v745, 0
        %779 = vmatprep.subr.mxu0 0.0
        %780 = vmatpush1.xpose.msra.mxu0 %v763
        %781 = vmatprep.subr.mxu0 0.0
        %782 = vmatpush1.xpose.msra.mxu0 %v765
        %783 = vmatprep.subr.mxu0 0.0
        %784 = vmatpush1.xpose.msra.mxu0 %v767
        %785 = vmatprep.subr.mxu0 0.0
        %786 = vmatpush1.xpose.msra.mxu0 %v769
        %787 = vmatprep.subr.mxu0 0.0
        %788 = vmatpush1.xpose.msra.mxu0 %v771
        %789 = vmatprep.subr.mxu0 0.0
        %790 = vmatpush1.xpose.msra.mxu0 %v773
        %791 = vmatprep.subr.mxu0 0.0
        %792 = vmatpush1.xpose.msra.mxu0 %v775
        %793 = vmatprep.subr.mxu0 0.0
        %794 = vmatpush1.xpose.msra.mxu0 %v777
        %795 = vmatprep.subr.mxu0 0.0
        %796 = vmatpush1.xpose.msra.mxu0 0.0
        %797 = vmatprep.subr.mxu0 0.0
        %798 = vmatpush1.xpose.msra.mxu0 0.0
        %799 = vmatprep.subr.mxu0 0.0
        %800 = vmatpush1.xpose.msra.mxu0 0.0
        %801 = vmatprep.subr.mxu0 0.0
        %802 = vmatpush1.xpose.msra.mxu0 0.0
        %803 = vmatprep.subr.mxu0 0.0
        %804 = vmatpush1.xpose.msra.mxu0 0.0
        %805 = vmatprep.subr.mxu0 0.0
        %806 = vmatpush1.xpose.msra.mxu0 0.0
        %807 = vmatprep.subr.mxu0 0.0
        %808 = vmatpush1.xpose.msra.mxu0 0.0
        %809 = vmatprep.subr.mxu0 0.0
        %810 = vmatpush1.xpose.msra.mxu0 0.0
        %811 = vmatprep.subr.mxu0 0.0
        %812 = vmatpush1.xpose.msra.mxu0 0.0
        %813 = vmatprep.subr.mxu0 0.0
        %814 = vmatpush1.xpose.msra.mxu0 0.0
        %815 = vmatprep.subr.mxu0 0.0
        %816 = vmatpush1.xpose.msra.mxu0 0.0
        %817 = vmatprep.subr.mxu0 0.0
        %818 = vmatpush1.xpose.msra.mxu0 0.0
        %819 = vmatprep.subr.mxu0 0.0
        %820 = vmatpush1.xpose.msra.mxu0 0.0
        %821 = vmatprep.subr.mxu0 0.0
        %822 = vmatpush1.xpose.msra.mxu0 0.0
        %823 = vmatprep.subr.mxu0 0.0
        %824 = vmatpush1.xpose.msra.mxu0 0.0
        %825 = vmatprep.subr.mxu0 0.0
        %826 = vmatpush1.xpose.msra.mxu0 0.0
        %827 = vmatprep.subr.mxu0 0.0
        %828 = vmatpush1.xpose.msra.mxu0 0.0
        %829 = vmatprep.subr.mxu0 0.0
        %830 = vmatpush1.xpose.msra.mxu0 0.0
        %831 = vmatprep.subr.mxu0 0.0
        %832 = vmatpush1.xpose.msra.mxu0 0.0
        %833 = vmatprep.subr.mxu0 0.0
        %834 = vmatpush1.xpose.msra.mxu0 0.0
        %835 = vmatprep.subr.mxu0 0.0
        %836 = vmatpush1.xpose.msra.mxu0 0.0
        %837 = vmatprep.subr.mxu0 0.0
        %838 = vmatpush1.xpose.msra.mxu0 0.0
        %839 = vmatprep.subr.mxu0 0.0
        %840 = vmatpush1.xpose.msra.mxu0 0.0
        %841 = vmatprep.subr.mxu0 0.0
        %842 = vmatpush1.xpose.msra.mxu0 0.0
        %843 = vmatprep.mubr.f32.mxu0 0.0
        %844 = vmatmul.mubr.f32.gmra.mrb[0].mxu0 %v747
        %v845 = vpop.f32.mrb[0].mxu0
        %v846 = vadd.f32 0.0, %v845
        %v847 = vpop.f32.mrb[0].mxu0
        %848 = vmatprep.mubr.f32.mxu0 0.0
        %849 = vmatmul.mubr.f32.gmra.mrb[0].mxu0 %v749
        %v850 = vpop.f32.mrb[0].mxu0
        %v851 = vadd.f32 0.0, %v850
        %v852 = vpop.f32.mrb[0].mxu0
        %853 = vmatprep.mubr.f32.mxu0 0.0
        %854 = vmatmul.mubr.f32.gmra.mrb[0].mxu0 %v751
        %v855 = vpop.f32.mrb[0].mxu0
        %v856 = vadd.f32 0.0, %v855
        %v857 = vpop.f32.mrb[0].mxu0
        %858 = vmatprep.mubr.f32.mxu0 0.0
        %859 = vmatmul.mubr.f32.gmra.mrb[0].mxu0 %v753
        %v860 = vpop.f32.mrb[0].mxu0
        %v861 = vadd.f32 0.0, %v860
        %v862 = vpop.f32.mrb[0].mxu0
        %863 = vmatprep.mubr.f32.mxu0 0.0
        %864 = vmatmul.mubr.f32.gmra.mrb[0].mxu0 %v755
        %v865 = vpop.f32.mrb[0].mxu0
        %v866 = vadd.f32 0.0, %v865
        %v867 = vpop.f32.mrb[0].mxu0
        %868 = vmatprep.mubr.f32.mxu0 0.0
        %869 = vmatmul.mubr.f32.gmra.mrb[0].mxu0 %v757
        %v870 = vpop.f32.mrb[0].mxu0
        %v871 = vadd.f32 0.0, %v870
        %v872 = vpop.f32.mrb[0].mxu0
        %873 = vmatprep.mubr.f32.mxu0 0.0
        %874 = vmatmul.mubr.f32.gmra.mrb[0].mxu0 %v759
        %v875 = vpop.f32.mrb[0].mxu0
        %v876 = vadd.f32 0.0, %v875
        %v877 = vpop.f32.mrb[0].mxu0
        %878 = vmatprep.mubr.f32.mxu0 0.0
        %879 = vmatmul.mubr.f32.gmra.mrb[0].mxu0 %v761
        %v880 = vpop.f32.mrb[0].mxu0
        %v881 = vadd.f32 0.0, %v880
        %v882 = vpop.f32.mrb[0].mxu0
        %883 = vdwg.mxu0
        %v884 = vmul.f32 %v846, 0.125
        %v885 = vmul.f32 %v851, 0.125
        %v886 = vmul.f32 %v856, 0.125
        %v887 = vmul.f32 %v861, 0.125
        %v888 = vmul.f32 %v866, 0.125
        %v889 = vmul.f32 %v871, 0.125
        %v890 = vmul.f32 %v876, 0.125
        %v891 = vmul.f32 %v881, 0.125
        %v892 = vlaneseq
        %v893 = vshrl.u32 %v892, 7
        %v894 = vadd.s32 %v893, 8
        %v895 = vadd.s32 %v893, 16
        %v896 = vadd.s32 %v893, 24
        %v897 = vadd.s32 %v893, 32
        %v898 = vadd.s32 %v893, 40
        %v899 = vadd.s32 %v893, 48
        %v900 = vadd.s32 %v893, 56
        %v901 = vlaneseq
        %v902 = vand.u32 %v901, 127
        %vm903 = vcmp.le.s32.totalorder %v902, %v893
        %vm904 = vcmp.le.s32.totalorder %v902, %v894
        %vm905 = vcmp.le.s32.totalorder %v902, %v895
        %vm906 = vcmp.le.s32.totalorder %v902, %v896
        %vm907 = vcmp.le.s32.totalorder %v902, %v897
        %vm908 = vcmp.le.s32.totalorder %v902, %v898
        %vm909 = vcmp.le.s32.totalorder %v902, %v899
        %vm910 = vcmp.le.s32.totalorder %v902, %v900
        %v911 = vsel %vm903, %v884, -1e+30
        %v912 = vsel %vm904, %v885, -1e+30
        %v913 = vsel %vm905, %v886, -1e+30
        %v914 = vsel %vm906, %v887, -1e+30
        %v915 = vsel %vm907, %v888, -1e+30
        %v916 = vsel %vm908, %v889, -1e+30
        %v917 = vsel %vm909, %v890, -1e+30
        %v918 = vsel %vm910, %v891, -1e+30
        %v919 = vsel %vm746, %v911, -inf
        %920 = vmax.xlane.f32.xlu0 %v919
        %v921 = vpop.xlane.xlu0 %920
        %v922 = vsel %vm746, %v912, -inf
        %923 = vmax.xlane.f32.xlu0 %v922
        %v924 = vpop.xlane.xlu0 %923
        %v925 = vsel %vm746, %v913, -inf
        %926 = vmax.xlane.f32.xlu0 %v925
        %v927 = vpop.xlane.xlu0 %926
        %v928 = vsel %vm746, %v914, -inf
        %929 = vmax.xlane.f32.xlu0 %v928
        %v930 = vpop.xlane.xlu0 %929
        %v931 = vsel %vm746, %v915, -inf
        %932 = vmax.xlane.f32.xlu0 %v931
        %v933 = vpop.xlane.xlu0 %932
        %v934 = vsel %vm746, %v916, -inf
        %935 = vmax.xlane.f32.xlu0 %v934
        %v936 = vpop.xlane.xlu0 %935
        %v937 = vsel %vm746, %v917, -inf
        %938 = vmax.xlane.f32.xlu0 %v937
        %v939 = vpop.xlane.xlu0 %938
        %v940 = vsel %vm746, %v918, -inf
        %941 = vmax.xlane.f32.xlu0 %v940
        %v942 = vpop.xlane.xlu0 %941
        %v943 = vsub.f32 %v911, %v921
        %v944 = vsub.f32 %v912, %v924
        %v945 = vsub.f32 %v913, %v927
        %v946 = vsub.f32 %v914, %v930
        %v947 = vsub.f32 %v915, %v933
        %v948 = vsub.f32 %v916, %v936
        %v949 = vsub.f32 %v917, %v939
        %v950 = vsub.f32 %v918, %v942
        %v951 = vmul.f32 %v943, 1.442695
        %v952 = vpow.pop %v951
        %v953 = vmul.f32 %v944, 1.442695
        %v954 = vpow.pop %v953
        %v955 = vmul.f32 %v945, 1.442695
        %v956 = vpow.pop %v955
        %v957 = vmul.f32 %v946, 1.442695
        %v958 = vpow.pop %v957
        %v959 = vmul.f32 %v947, 1.442695
        %v960 = vpow.pop %v959
        %v961 = vmul.f32 %v948, 1.442695
        %v962 = vpow.pop %v961
        %v963 = vmul.f32 %v949, 1.442695
        %v964 = vpow.pop %v963
        %v965 = vmul.f32 %v950, 1.442695
        %v966 = vpow.pop %v965
        %v967 = vsel %vm746, %v952, 0.0
        %968 = vadd.xlane.f32.xlu0 %v967
        %v969 = vpop.xlane.xlu0 %968
        %v970 = vsel %vm746, %v954, 0.0
        %971 = vadd.xlane.f32.xlu0 %v970
        %v972 = vpop.xlane.xlu0 %971
        %v973 = vsel %vm746, %v956, 0.0
        %974 = vadd.xlane.f32.xlu0 %v973
        %v975 = vpop.xlane.xlu0 %974
        %v976 = vsel %vm746, %v958, 0.0
        %977 = vadd.xlane.f32.xlu0 %v976
        %v978 = vpop.xlane.xlu0 %977
        %v979 = vsel %vm746, %v960, 0.0
        %980 = vadd.xlane.f32.xlu0 %v979
        %v981 = vpop.xlane.xlu0 %980
        %v982 = vsel %vm746, %v962, 0.0
        %983 = vadd.xlane.f32.xlu0 %v982
        %v984 = vpop.xlane.xlu0 %983
        %v985 = vsel %vm746, %v964, 0.0
        %986 = vadd.xlane.f32.xlu0 %v985
        %v987 = vpop.xlane.xlu0 %986
        %v988 = vsel %vm746, %v966, 0.0
        %989 = vadd.xlane.f32.xlu0 %v988
        %v990 = vpop.xlane.xlu0 %989
        %v991 = vrcp.pop %v969
        %v992 = vmul.f32 %v952, %v991
        %v993 = vrcp.pop %v972
        %v994 = vmul.f32 %v954, %v993
        %v995 = vrcp.pop %v975
        %v996 = vmul.f32 %v956, %v995
        %v997 = vrcp.pop %v978
        %v998 = vmul.f32 %v958, %v997
        %v999 = vrcp.pop %v981
        %v1000 = vmul.f32 %v960, %v999
        %v1001 = vrcp.pop %v984
        %v1002 = vmul.f32 %v962, %v1001
        %v1003 = vrcp.pop %v987
        %v1004 = vmul.f32 %v964, %v1003
        %v1005 = vrcp.pop %v990
        %v1006 = vmul.f32 %v966, %v1005
        %v1008 = vsel %vm746, %v992, 0
        %v1011 = vsel %vm746, %v994, 0
        %v1014 = vsel %vm746, %v996, 0
        %v1017 = vsel %vm746, %v998, 0
        %v1020 = vsel %vm746, %v1000, 0
        %v1023 = vsel %vm746, %v1002, 0
        %v1026 = vsel %vm746, %v1004, 0
        %v1029 = vsel %vm746, %v1006, 0
        %1031 = vmatprep.subr.mxu0 0.0
        %1032 = vmatpush1.msra.mxu0 %v678
        %1033 = vmatprep.subr.mxu0 0.0
        %1034 = vmatpush1.msra.mxu0 %v684
        %1035 = vmatprep.subr.mxu0 0.0
        %1036 = vmatpush1.msra.mxu0 %v690
        %1037 = vmatprep.subr.mxu0 0.0
        %1038 = vmatpush1.msra.mxu0 %v696
        %1039 = vmatprep.subr.mxu0 0.0
        %1040 = vmatpush1.msra.mxu0 %v702
        %1041 = vmatprep.subr.mxu0 0.0
        %1042 = vmatpush1.msra.mxu0 %v708
        %1043 = vmatprep.subr.mxu0 0.0
        %1044 = vmatpush1.msra.mxu0 %v714
        %1045 = vmatprep.subr.mxu0 0.0
        %1046 = vmatpush1.msra.mxu0 %v720
        %1047 = vmatprep.subr.mxu0 0.0
        %1048 = vmatpush1.msra.mxu0 0.0
        %1049 = vmatprep.subr.mxu0 0.0
        %1050 = vmatpush1.msra.mxu0 0.0
        %1051 = vmatprep.subr.mxu0 0.0
        %1052 = vmatpush1.msra.mxu0 0.0
        %1053 = vmatprep.subr.mxu0 0.0
        %1054 = vmatpush1.msra.mxu0 0.0
        %1055 = vmatprep.subr.mxu0 0.0
        %1056 = vmatpush1.msra.mxu0 0.0
        %1057 = vmatprep.subr.mxu0 0.0
        %1058 = vmatpush1.msra.mxu0 0.0
        %1059 = vmatprep.subr.mxu0 0.0
        %1060 = vmatpush1.msra.mxu0 0.0
        %1061 = vmatprep.subr.mxu0 0.0
        %1062 = vmatpush1.msra.mxu0 0.0
        %1063 = vmatprep.subr.mxu0 0.0
        %1064 = vmatpush1.msra.mxu0 0.0
        %1065 = vmatprep.subr.mxu0 0.0
        %1066 = vmatpush1.msra.mxu0 0.0
        %1067 = vmatprep.subr.mxu0 0.0
        %1068 = vmatpush1.msra.mxu0 0.0
        %1069 = vmatprep.subr.mxu0 0.0
        %1070 = vmatpush1.msra.mxu0 0.0
        %1071 = vmatprep.subr.mxu0 0.0
        %1072 = vmatpush1.msra.mxu0 0.0
        %1073 = vmatprep.subr.mxu0 0.0
        %1074 = vmatpush1.msra.mxu0 0.0
        %1075 = vmatprep.subr.mxu0 0.0
        %1076 = vmatpush1.msra.mxu0 0.0
        %1077 = vmatprep.subr.mxu0 0.0
        %1078 = vmatpush1.msra.mxu0 0.0
        %1079 = vmatprep.subr.mxu0 0.0
        %1080 = vmatpush1.msra.mxu0 0.0
        %1081 = vmatprep.subr.mxu0 0.0
        %1082 = vmatpush1.msra.mxu0 0.0
        %1083 = vmatprep.subr.mxu0 0.0
        %1084 = vmatpush1.msra.mxu0 0.0
        %1085 = vmatprep.subr.mxu0 0.0
        %1086 = vmatpush1.msra.mxu0 0.0
        %1087 = vmatprep.subr.mxu0 0.0
        %1088 = vmatpush1.msra.mxu0 0.0
        %1089 = vmatprep.subr.mxu0 0.0
        %1090 = vmatpush1.msra.mxu0 0.0
        %1091 = vmatprep.subr.mxu0 0.0
        %1092 = vmatpush1.msra.mxu0 0.0
        %1093 = vmatprep.subr.mxu0 0.0
        %1094 = vmatpush1.msra.mxu0 0.0
        %1095 = vmatprep.mubr.f32.mxu0 0.0
        %1096 = vmatmul.mubr.f32.gmra.mrb[0].mxu0 %v1008
        %v1097 = vpop.f32.mrb[0].mxu0
        %v1098 = vadd.f32 0.0, %v1097
        %v1099 = vpop.f32.mrb[0].mxu0
        %1100 = vmatprep.mubr.f32.mxu0 0.0
        %1101 = vmatmul.mubr.f32.gmra.mrb[0].mxu0 %v1011
        %v1102 = vpop.f32.mrb[0].mxu0
        %v1103 = vadd.f32 0.0, %v1102
        %v1104 = vpop.f32.mrb[0].mxu0
        %1105 = vmatprep.mubr.f32.mxu0 0.0
        %1106 = vmatmul.mubr.f32.gmra.mrb[0].mxu0 %v1014
        %v1107 = vpop.f32.mrb[0].mxu0
        %v1108 = vadd.f32 0.0, %v1107
        %v1109 = vpop.f32.mrb[0].mxu0
        %1110 = vmatprep.mubr.f32.mxu0 0.0
        %1111 = vmatmul.mubr.f32.gmra.mrb[0].mxu0 %v1017
        %v1112 = vpop.f32.mrb[0].mxu0
        %v1113 = vadd.f32 0.0, %v1112
        %v1114 = vpop.f32.mrb[0].mxu0
        %1115 = vmatprep.mubr.f32.mxu0 0.0
        %1116 = vmatmul.mubr.f32.gmra.mrb[0].mxu0 %v1020
        %v1117 = vpop.f32.mrb[0].mxu0
        %v1118 = vadd.f32 0.0, %v1117
        %v1119 = vpop.f32.mrb[0].mxu0
        %1120 = vmatprep.mubr.f32.mxu0 0.0
        %1121 = vmatmul.mubr.f32.gmra.mrb[0].mxu0 %v1023
        %v1122 = vpop.f32.mrb[0].mxu0
        %v1123 = vadd.f32 0.0, %v1122
        %v1124 = vpop.f32.mrb[0].mxu0
        %1125 = vmatprep.mubr.f32.mxu0 0.0
        %1126 = vmatmul.mubr.f32.gmra.mrb[0].mxu0 %v1026
        %v1127 = vpop.f32.mrb[0].mxu0
        %v1128 = vadd.f32 0.0, %v1127
        %v1129 = vpop.f32.mrb[0].mxu0
        %1130 = vmatprep.mubr.f32.mxu0 0.0
        %1131 = vmatmul.mubr.f32.gmra.mrb[0].mxu0 %v1029
        %v1132 = vpop.f32.mrb[0].mxu0
        %v1133 = vadd.f32 0.0, %v1132
        %v1134 = vpop.f32.mrb[0].mxu0
        %1135 = vdwg.mxu0
        %1136 = vst.msk [vmem:[%s163] sm:$0xff] %vm746, %v1098
        %1137 = vst.msk [vmem:[%s163 + $0x8] sm:$0xff] %vm746, %v1103
        %1138 = vst.msk [vmem:[%s163 + $0x10] sm:$0xff] %vm746, %v1108
        %1139 = vst.msk [vmem:[%s163 + $0x18] sm:$0xff] %vm746, %v1113
        %1140 = vst.msk [vmem:[%s163 + $0x20] sm:$0xff] %vm746, %v1118
        %1141 = vst.msk [vmem:[%s163 + $0x28] sm:$0xff] %vm746, %v1123
        %1142 = vst.msk [vmem:[%s163 + $0x30] sm:$0xff] %vm746, %v1128
        %1143 = vst.msk [vmem:[%s163 + $0x38] sm:$0xff] %vm746, %v1133
        %s1144 = sand.u32 %s93, 1
        %s1145 = scalar_lea.sflag [#allocation3], %s1144
        %s1146 = sand.u32 %s93, 1
        %s1147 = smul.addr %s1146, 64
        %s1148 = scalar_lea.vmem [#allocation2], %s1147
        // Predicated region
        $region33: #{head_forward.1} parent=31 // pred_check
          %p1149 = pneg %p103
        $region34: #{head_forward.1} parent=31 // pred_check_branch
          %1151 = sbr.rel (%p1149) target = $region36
        $region35: #{head_forward.1} parent=31 // pred_region
          %s1153 = ssub.s32 1024, 1024
          %1154 = vsyncadd %s1145, %s1153
          %s1155 = smul.addr %s17, 8
          %s1156 = smul.addr %s1155, 128
          %s1157 = scalar_lea.hbm %s3, %s1156
          %s1158 = sshll.u32 %s1148, 4
          %s1159 = int_to_ptr.vmem [resolvable:$true] %s1158
          %1164 = dma.vmem_to_hbm [thread:$0]  %s1159, 1024, %s1157, %s1145, 128, 128, 8
        $region36: #{head_forward.1} parent=31 // pred_fallthru
          _
      $region32: #{head_forward.1} parent=5 // pred_fallthru
        _
      %p1165 = scmp.le.s32.totalorder 2, %s12
      // Predicated region
      $region37: #{head_forward.1} parent=5 // pred_check
        %p1166 = pneg %p1165
      $region38: #{head_forward.1} parent=5 // pred_check_branch
        %1168 = sbr.rel (%p1166) target = $region40
      $region39: #{head_forward.1} parent=5 // pred_region
        %s1169 = ssub.s32 %s12, 2
        // Predicated region
        $region41: #{head_forward.1} parent=39 // pred_check
          %p1170 = pneg %p109
        $region42: #{head_forward.1} parent=39 // pred_check_branch
          %1172 = sbr.rel (%p1170) target = $region44
        $region43: #{head_forward.1} parent=39 // pred_region
          %s1173 = sand.u32 %s94, 1
          %s1174 = scalar_lea.sflag [#allocation3], %s1173
          %s1175 = sand.u32 %s94, 1
          %s1176 = smul.addr %s1175, 64
          %s1177 = scalar_lea.vmem [#allocation2], %s1176
          %1178 = dma.done %s1174, 1024
        $region44: #{head_forward.1} parent=39 // pred_fallthru
          _
      $region40: #{head_forward.1} parent=5 // pred_fallthru
        _
    $region6: #{head_forward.1} parent=1 // loop_footer
      %s16 = sadd.s32 1, %s12
    $region7: #{head_forward.1} parent=1 // loop_footer_branch
      %11 = sbr.rel target = $region3
    $region8: #{head_forward.1} parent=1 // loop_exit
      _
    %1179 = vsyncpa [#allocation3], 1
    %s1180 = scalar_lea.sflag [#allocation3], 1
    %1181 = vsyncpa %s1180, 1

</llo_original>
